<compile_context>
chip_gen: v6e
topology: v6e:2x2x1
jax: 0.10.0
libtpu: 0.0.40
codegen_flags: <defaults>
</compile_context>

<pallas_src>
import jax
import jax.numpy as jnp
import numpy as np
from jax.experimental import pallas as pl
from jax.experimental.pallas import tpu as pltpu


def _identity_kernel(z_ref, o_ref):
    # Pass the latent tile through VMEM unchanged.
    o_ref[...] = z_ref[...]


def _round_up(x: int, m: int) -> int:
    return ((x + m - 1) // m) * m


def _round_down(x: int, m: int) -> int:
    return (x // m) * m


# Per-tile byte budget: in + out tiles, each double-buffered, must stay well
# under the 32 MiB default scoped-VMEM limit (and v7x's 64 MiB physical VMEM).
# 4 MiB/tile -> worst case 4 buffers x 4 MiB = 16 MiB.
_MAX_TILE_BYTES = 4 * 1024 * 1024


def base_decoder_forward(z: jax.Array) -> jax.Array:
    """Identity pass-through of the latent z (the base class defines no compute).

    The input device buffer is donated (aliased to the output), so no new HBM
    allocation is made; do not reuse `z` on device after this call.
    """
    assert z.ndim == 2, f"expected latent z of shape [B, D], got {z.shape}"
    B, D = z.shape
    itemsize = jnp.dtype(z.dtype).itemsize
    # Minimum sublane multiple for a non-full block: 8 (f32), 16 (bf16), 32 (i8/fp8).
    sub = max(8, 32 // itemsize)

    # ---- lane (last) dim -------------------------------------------------
    # Keep the full feature dim on the lane axis when it is modest: lane-dense,
    # unmasked stores, contiguous row-major DMAs.  Only tile D when it is both
    # large and a multiple of 128 (a non-full block's lane dim must be a
    # multiple of 128).
    if D > 2048 and D % 128 == 0:
        td = 2048
    else:
        td = D  # full-extent last dim is always a legal block shape

    # ---- sublane (second-to-last) dim -------------------------------------
    if B <= sub:
        tb = B  # full-extent: always legal, even when B < the sublane multiple
    else:
        # Largest row count (multiple of `sub`) fitting the per-tile budget.
        rows_budget = max(sub, _round_down(_MAX_TILE_BYTES // (td * itemsize), sub))
        # Aim for at least two row-blocks so v7x's two TensorCores both get work.
        target_rows = _round_up(pl.cdiv(B, 2), sub)
        tb = max(sub, min(rows_budget, target_rows))

    nb = pl.cdiv(B, tb)

    if td == D:
        # 1-D grid over the batch axis; ragged last block handled by Pallas.
        grid = (nb,)
        in_spec = pl.BlockSpec((tb, D), lambda i: (i, 0))
        out_spec = pl.BlockSpec((tb, D), lambda i: (i, 0))
        dim_sem = ("parallel",)
    else:
        nd = pl.cdiv(D, td)
        grid = (nb, nd)
        in_spec = pl.BlockSpec((tb, td), lambda i, j: (i, j))
        out_spec = pl.BlockSpec((tb, td), lambda i, j: (i, j))
        dim_sem = ("parallel", "parallel")

    return pl.pallas_call(
        _identity_kernel,
        out_shape=jax.ShapeDtypeStruct((B, D), z.dtype),
        grid=grid,
        in_specs=[in_spec],
        out_specs=out_spec,
        # Output aliases the input: no fresh HBM buffer, in-place writeback.
        input_output_aliases={0: 0},
        compiler_params=pltpu.CompilerParams(dimension_semantics=dim_sem),
    )(z)


if __name__ == "__main__":
    key = jax.random.PRNGKey(0)
    # Small latent batch consistent with a VAE decoder input: batch=2, latent=32.
    z = jax.random.normal(key, (2, 32), dtype=jnp.float32)

    # The device buffer of `z` is donated to the kernel (input/output aliasing),
    # so grab a host copy for the correctness check before calling it.
    z_host = np.asarray(jax.device_get(z))

    out = base_decoder_forward(z)
    out = jax.block_until_ready(out)

    # Sanity: identity pass-through must match the input exactly.
    assert out.shape == z_host.shape and out.dtype == z_host.dtype
    assert np.array_equal(np.asarray(jax.device_get(out)), z_host)

    print("KERNEL_OK")
</pallas_src>

<mosaic_0001>
module attributes {stable_mosaic.version = 11 : i64} {
  func.func @_identity_kernel(%arg0: i32, %arg1: memref<2x32xf32, #tpu.memory_space<vmem>>, %arg2: memref<2x32xf32, #tpu.memory_space<vmem>>) attributes {dimension_semantics = [#tpu.dimension_semantics<parallel>], iteration_bounds = array<i64: 1>, scalar_prefetch = 0 : i64, scratch_operands = 0 : i64, tpu.core_type = #tpu.core_type<tc>, window_params = [{transform_indices = @transform_0, window_bounds = array<i64: 2, 32>}, {transform_indices = @transform_1, window_bounds = array<i64: 2, 32>}]} {
    %c0 = arith.constant 0 : index
    %c0_0 = arith.constant 0 : index
    %0 = vector.load %arg1[%c0, %c0_0] : memref<2x32xf32, #tpu.memory_space<vmem>>, vector<2x32xf32>
    %c0_1 = arith.constant 0 : index
    %c0_2 = arith.constant 0 : index
    %1 = vector.load %arg2[%c0_1, %c0_2] : memref<2x32xf32, #tpu.memory_space<vmem>>, vector<2x32xf32>
    tpu.vector_store %arg2[%c0_1, %c0_2], %0 {strides = array<i32>} : memref<2x32xf32, #tpu.memory_space<vmem>>, vector<2x32xf32>,
    return
  }
  func.func @transform_0(%arg0: i32) -> (i32, i32) {
    %c0_i32 = arith.constant 0 : i32
    %c0_i32_0 = arith.constant 0 : i32
    return %arg0, %c0_i32 : i32, i32
  }
  func.func @transform_1(%arg0: i32) -> (i32, i32) {
    %c0_i32 = arith.constant 0 : i32
    %c0_i32_0 = arith.constant 0 : i32
    return %arg0, %c0_i32 : i32, i32
  }
}

</mosaic_0001>

<llo_original>
// kernel: tpu_custom_call.1
$region0: #{tpu_custom_call.1}
  #allocation0 [shape = 'u32[]', space=smem, size = 0x4, offset = 0x4, fixed_abs, tag = 'smem constant byte address 0x4 - core index']
  #allocation1 [shape = 'u32[144,128]{1,0:T(1,128)}', space=vmem, size = 0x12000, scoped, tag = 'internal scratch']
  %s0 = inlined_call_operand.hbm [shape: f32[2,32], index: 0, kind: input, shape index: {}, may-alias: {0,1}]
  %s1 = inlined_call_operand.hbm [shape: f32[2,32], index: 1, kind: output, shape index: {}, may-alias: {0,1}]
  %s2 = sld [smem:[#allocation0]]
  $region18: #{tpu_custom_call.1} parent=0
    _
  %s4 = ssub.s32 1, %s2
  %s5 = scalar_select 0, %s4, %s2
  $region1: #{tpu_custom_call.1} parent=0
    #allocation2 [shape = 'u8[1024]{0}', space=vmem, size = 0x400, scoped, tag = 'input window, operand 0, single buffered']
    #allocation3 [shape = 's32[1]{0}', space=sflag, size = 0x4, scoped, tag = 'scoped memory for tpu_custom_call.1']
    #allocation4 [shape = 's32[1]{0}', space=sflag, size = 0x4, scoped, tag = 'scoped memory for tpu_custom_call.1']
    #allocation5 [shape = 'u8[1024]{0}', space=vmem, size = 0x400, scoped, tag = 'output window, operand 0, single buffered']
    %6 = vsyncpa [#allocation3], 0
    %7 = vsyncpa [#allocation4], 0
    // Predicated region
    $region2: #{tpu_custom_call.1} parent=1 // pred_check
      _
    $region3: #{tpu_custom_call.1} parent=1 // pred_check_branch
      %9 = sbr.rel (0) target = $region5
    $region4: #{tpu_custom_call.1} parent=1 // pred_region
      %s11 = ssub.s32 32, 32
      %12 = vsyncadd [#allocation3], %s11
      %s14 = sshll.u32 [#allocation2], 4
      %s15 = int_to_ptr.vmem [resolvable:$true] %s14
      %17 = dma.hbm_to_vmem [thread:$0]  %s0, 32, %s15, [#allocation3]
    $region5: #{tpu_custom_call.1} parent=1 // pred_fallthru
      _
    // Predicated region
    $region6: #{tpu_custom_call.1} parent=1 // pred_check
      _
    $region7: #{tpu_custom_call.1} parent=1 // pred_check_branch
      %19 = sbr.rel (0) target = $region9
    $region8: #{tpu_custom_call.1} parent=1 // pred_region
      %20 = dma.done [#allocation3], 32
    $region9: #{tpu_custom_call.1} parent=1 // pred_fallthru
      _
    %v21 = vld [vmem:[#allocation2] sm:$0x3]
    %vm22 = vcmask 254976
    %23 = vst.msk [vmem:[#allocation5] sm:$0x3] %vm22, %v21
    // Predicated region
    $region10: #{tpu_custom_call.1} parent=1 // pred_check
      _
    $region11: #{tpu_custom_call.1} parent=1 // pred_check_branch
      %25 = sbr.rel (0) target = $region13
    $region12: #{tpu_custom_call.1} parent=1 // pred_region
      %s27 = ssub.s32 32, 32
      %28 = vsyncadd [#allocation4], %s27
      %s30 = sshll.u32 [#allocation5], 4
      %s31 = int_to_ptr.vmem [resolvable:$true] %s30
      %33 = dma.vmem_to_hbm [thread:$0]  %s31, 32, %s1, [#allocation4]
    $region13: #{tpu_custom_call.1} parent=1 // pred_fallthru
      _
    // Predicated region
    $region14: #{tpu_custom_call.1} parent=1 // pred_check
      _
    $region15: #{tpu_custom_call.1} parent=1 // pred_check_branch
      %35 = sbr.rel (0) target = $region17
    $region16: #{tpu_custom_call.1} parent=1 // pred_region
      %36 = dma.done [#allocation4], 32
    $region17: #{tpu_custom_call.1} parent=1 // pred_fallthru
      _
    %37 = vsyncpa [#allocation3], 1
    %38 = vsyncpa [#allocation4], 1

</llo_original>
